<compile_context>
chip_gen: v6e
topology: v6e:2x2x1
jax: 0.10.0
libtpu: 0.0.40
codegen_flags: <defaults>
</compile_context>

<pallas_src>
import functools

import jax
import jax.numpy as jnp
from jax.experimental import pallas as pl
from jax.experimental.pallas import tpu as pltpu


def _round_up(x, n):
    return ((x + n - 1) // n) * n


@functools.lru_cache(maxsize=None)
def _vmem_limit_bytes():
    """Generation-aware scoped-VMEM limit with headroom."""
    cap = None
    try:
        info = pltpu.get_tpu_info()
        cap = int(getattr(info, "vmem_capacity_bytes", 0)) or None
    except Exception:
        cap = None
    if cap is None:
        # Conservative: fits v7x's 64 MiB physical VMEM, still raises v5e/v6e defaults.
        return 48 * 1024 * 1024
    if cap <= 64 * 1024 * 1024:           # v7x-class: leave room for internal scratch
        return max(cap - 12 * 1024 * 1024, 32 * 1024 * 1024)
    return min(96 * 1024 * 1024, cap)     # v5e/v6e: 128 MiB physical -> 96 MiB scoped


def prepare_ao_weights(w_lin, b_lin, w_a, b_a, *, compute_dtype=jnp.bfloat16):
    """One-time weight preparation (hoisted out of the per-call path).

    Weights are (in_features, out_features), i.e. transposed w.r.t. nn.Linear.
      * fold: cat([ft, ft], -1) @ W_a == ft @ (W_a[:h2] + W_a[h2:])  (exact up to FP order)
      * pad h2 and tag up to multiples of 128 (zero pads are exact: padded ft columns are
        relu(0 + 0) = 0 and the matching folded-weight rows are 0) -> full (8,128) tiles
        and lane-dense unmasked output stores.
      * cast matmul operands to compute_dtype; biases / accumulation stay f32.
    """
    h, h2 = w_lin.shape
    tag = w_a.shape[1]
    assert w_a.shape[0] == h and h == 2 * h2

    w_fold = w_a[:h2].astype(jnp.float32) + w_a[h2:].astype(jnp.float32)

    h2p = _round_up(h2, 128)
    tagp = _round_up(tag, 128)

    w1 = jnp.pad(w_lin.astype(jnp.float32), ((0, 0), (0, h2p - h2)))
    b1 = jnp.pad(b_lin.astype(jnp.float32), (0, h2p - h2)).reshape(1, h2p)
    wf = jnp.pad(w_fold, ((0, h2p - h2), (0, tagp - tag)))
    ba = jnp.pad(b_a.astype(jnp.float32), (0, tagp - tag)).reshape(1, tagp)

    return {
        "w1": w1.astype(compute_dtype),
        "b1": b1,
        "wf": wf.astype(compute_dtype),
        "ba": ba,
        "tag": int(tag),
        "hidden": int(h),
    }


def _ao_kernel(x_ref, w1_ref, b1_ref, wf_ref, ba_ref, out_ref):
    # x_ref:  (TM, H)      row-tile of flattened input, compute dtype
    # w1_ref: (H, H2P)     self.linear weight (in, out), compute dtype, single-buffered
    # b1_ref: (1, H2P)     f32
    # wf_ref: (H2P, TAGP)  folded linear_a weight, compute dtype, single-buffered
    # ba_ref: (1, TAGP)    f32
    # out_ref:(TM, TAGP)   sub_output (== obj_output), lane-dense padded
    ft = jnp.dot(x_ref[...], w1_ref[...], preferred_element_type=jnp.float32)
    ft = jnp.maximum(ft + b1_ref[...], 0.0)            # relu; dropout == identity (eval)
    ft = ft.astype(wf_ref.dtype)
    out = jnp.dot(ft, wf_ref[...], preferred_element_type=jnp.float32) + ba_ref[...]
    out_ref[...] = out.astype(out_ref.dtype)


def _choose_tile_m(m, h, h2p, tagp, cdt_bytes, out_bytes, vmem_limit, tile_m):
    # sublane granularity: bf16 packs 16 rows per vreg sublane group
    sub = 16 if cdt_bytes < 4 else 8
    if tile_m is None:
        # single-buffered resident weights + 8 MiB headroom for ft / compiler internals
        weight_bytes = (h * h2p + h2p * tagp) * cdt_bytes + (h2p + tagp) * 4
        budget = max(vmem_limit - weight_bytes - (8 << 20), 1 << 20)
        # double-buffered x tile, double-buffered out tile, f32 ft intermediate
        per_row = 2 * h * cdt_bytes + 2 * tagp * out_bytes + h2p * 4
        tile_m = max(sub, min(1024, (budget // per_row) // sub * sub))
    # Keep >=2 grid programs when the input allows it (v7x has 2 TensorCores and the
    # single grid axis is sharded across them via "parallel").
    tile_m = min(int(tile_m), max(sub, _round_up((m + 1) // 2, sub)))
    return _round_up(int(tile_m), sub)


@functools.partial(jax.jit, static_argnames=("tile_m", "tag", "vmem_limit"))
def _ao_forward(x, w1, b1, wf, ba, *, tile_m, tag, vmem_limit):
    bs, seq, h = x.shape
    h2p = w1.shape[1]
    tagp = wf.shape[1]
    m = bs * seq
    tm = tile_m

    x2 = x.reshape(m, h).astype(w1.dtype)

    flops = 2 * m * (h * h2p + h2p * tagp)
    bytes_accessed = (
        m * h * x2.dtype.itemsize
        + (h * h2p + h2p * tagp) * w1.dtype.itemsize
        + (h2p + tagp) * 4
        + m * tagp * x.dtype.itemsize
    )

    out = pl.pallas_call(
        _ao_kernel,
        out_shape=jax.ShapeDtypeStruct((m, tagp), x.dtype),
        grid_spec=pltpu.PrefetchScalarGridSpec(
            num_scalar_prefetch=0,
            grid=(pl.cdiv(m, tm),),
            in_specs=[
                # row tile of x (partial last block handled by Pallas; rows independent)
                pl.BlockSpec((tm, h), lambda i: (i, 0)),
                # grid-invariant operands: single-buffered
                pl.BlockSpec((h, h2p), lambda i: (0, 0), pipeline_mode=pl.Buffered(1)),
                pl.BlockSpec((1, h2p), lambda i: (0, 0), pipeline_mode=pl.Buffered(1)),
                pl.BlockSpec((h2p, tagp), lambda i: (0, 0), pipeline_mode=pl.Buffered(1)),
                pl.BlockSpec((1, tagp), lambda i: (0, 0), pipeline_mode=pl.Buffered(1)),
            ],
            out_specs=pl.BlockSpec((tm, tagp), lambda i: (i, 0)),
        ),
        compiler_params=pltpu.CompilerParams(
            dimension_semantics=("parallel",),
            vmem_limit_bytes=vmem_limit,
        ),
        cost_estimate=pl.CostEstimate(
            flops=flops, transcendentals=0, bytes_accessed=bytes_accessed
        ),
    )(x2, w1, b1, wf, ba)

    return out[:, :tag].reshape(bs, seq, tag)


def sequence_label_for_ao(x, prepared, *, tile_m=None):
    """x: (bs, seq, hidden).  `prepared` comes from prepare_ao_weights().

    Returns (sub_output, obj_output), each (bs, seq, tag).
    """
    bs, seq, h = x.shape
    assert h == prepared["hidden"]
    m = bs * seq
    cdt_bytes = jnp.dtype(prepared["w1"].dtype).itemsize
    h2p = prepared["w1"].shape[1]
    tagp = prepared["wf"].shape[1]
    vmem_limit = _vmem_limit_bytes()
    tm = _choose_tile_m(m, h, h2p, tagp, cdt_bytes, x.dtype.itemsize, vmem_limit, tile_m)

    sub = _ao_forward(
        x, prepared["w1"], prepared["b1"], prepared["wf"], prepared["ba"],
        tile_m=tm, tag=prepared["tag"], vmem_limit=vmem_limit,
    )
    # sub_output and obj_output are bit-identical in the reference module (linear_o is
    # never used), so return the same array twice instead of storing it twice.
    return sub, sub


def init_params(key, hidden_size, tag_size):
    """Deterministic parameter init mirroring the module's __init__ shapes (weights (in, out)).

    hidden2tag_sub / hidden2tag_obj / linear_o are created for shape fidelity but do not
    affect the forward output (their results are discarded / never used in the original code).
    """
    h2 = hidden_size // 2
    keys = jax.random.split(key, 10)

    def lin(kw, kb, fan_in, fan_out):
        bound = 1.0 / jnp.sqrt(fan_in)
        w = jax.random.uniform(kw, (fan_in, fan_out), jnp.float32, -bound, bound)
        b = jax.random.uniform(kb, (fan_out,), jnp.float32, -bound, bound)
        return w, b

    return {
        "linear": lin(keys[0], keys[1], hidden_size, h2),
        "hidden2tag_sub": lin(keys[2], keys[3], hidden_size, h2),   # unused in fwd
        "hidden2tag_obj": lin(keys[4], keys[5], hidden_size, h2),   # unused in fwd
        "linear_a": lin(keys[6], keys[7], hidden_size, tag_size),
        "linear_o": lin(keys[8], keys[9], hidden_size, tag_size),   # unused in fwd
    }


def reference_forward(x, params):
    """Pure-JAX reference implementing the exact PyTorch semantics (eval mode)."""
    w1, b1 = params["linear"]
    wa, ba = params["linear_a"]
    ft = jnp.maximum(jnp.einsum("bsh,hk->bsk", x, w1) + b1, 0.0)
    feats = jnp.concatenate([ft, ft], axis=-1)
    out = jnp.einsum("bsh,ht->bst", feats, wa) + ba
    return out, out


if __name__ == "__main__":
    bs, seq, hidden, tag = 2, 8, 32, 5
    key = jax.random.PRNGKey(0)
    kx, kp = jax.random.split(key)

    x = jax.random.normal(kx, (bs, seq, hidden), jnp.float32)
    params = init_params(kp, hidden, tag)
    w1, b1 = params["linear"]
    wa, ba = params["linear_a"]

    ref_sub, ref_obj = reference_forward(x, params)

    # Exact (f32) path: tight tolerance vs. the pure-JAX reference.
    prep_f32 = prepare_ao_weights(w1, b1, wa, ba, compute_dtype=jnp.float32)
    sub32, obj32 = sequence_label_for_ao(x, prep_f32)
    sub32 = jax.block_until_ready(sub32)
    obj32 = jax.block_until_ready(obj32)
    assert sub32.shape == (bs, seq, tag) and obj32.shape == (bs, seq, tag)
    assert jnp.allclose(sub32, ref_sub, atol=1e-4, rtol=1e-5)
    assert jnp.allclose(obj32, ref_obj, atol=1e-4, rtol=1e-5)

    # Fast (bf16 MXU) path: bf16-appropriate tolerance.
    prep_bf16 = prepare_ao_weights(w1, b1, wa, ba, compute_dtype=jnp.bfloat16)
    sub16, obj16 = sequence_label_for_ao(x, prep_bf16)
    sub16 = jax.block_until_ready(sub16)
    assert sub16.shape == (bs, seq, tag)
    assert jnp.allclose(sub16, ref_sub, atol=5e-2, rtol=5e-2)

    print("KERNEL_OK")
</pallas_src>

<mosaic_0001>
module attributes {stable_mosaic.version = 11 : i64} {
  func.func @_ao_kernel(%arg0: i32, %arg1: memref<8x32xf32, #tpu.memory_space<vmem>>, %arg2: memref<32x128xf32, #tpu.memory_space<vmem>>, %arg3: memref<1x128xf32, #tpu.memory_space<vmem>>, %arg4: memref<128x128xf32, #tpu.memory_space<vmem>>, %arg5: memref<1x128xf32, #tpu.memory_space<vmem>>, %arg6: memref<8x128xf32, #tpu.memory_space<vmem>>) attributes {dimension_semantics = [#tpu.dimension_semantics<parallel>], iteration_bounds = array<i64: 2>, scalar_prefetch = 0 : i64, scratch_operands = 0 : i64, tpu.core_type = #tpu.core_type<tc>, window_params = [{transform_indices = @transform_0, window_bounds = array<i64: 8, 32>}, {pipeline_mode = #tpu.pipeline_mode<synchronous>, transform_indices = @transform_1, window_bounds = array<i64: 32, 128>}, {pipeline_mode = #tpu.pipeline_mode<synchronous>, transform_indices = @transform_2, window_bounds = array<i64: 1, 128>}, {pipeline_mode = #tpu.pipeline_mode<synchronous>, transform_indices = @transform_3, window_bounds = array<i64: 128, 128>}, {pipeline_mode = #tpu.pipeline_mode<synchronous>, transform_indices = @transform_4, window_bounds = array<i64: 1, 128>}, {transform_indices = @transform_5, window_bounds = array<i64: 8, 128>}]} {
    %c0 = arith.constant 0 : index
    %c0_0 = arith.constant 0 : index
    %0 = vector.load %arg1[%c0, %c0_0] : memref<8x32xf32, #tpu.memory_space<vmem>>, vector<8x32xf32>
    %c0_1 = arith.constant 0 : index
    %c0_2 = arith.constant 0 : index
    %1 = vector.load %arg2[%c0_1, %c0_2] : memref<32x128xf32, #tpu.memory_space<vmem>>, vector<32x128xf32>
    %cst = arith.constant dense<0.000000e+00> : vector<8x128xf32>
    %2 = tpu.matmul %0, %1, %cst {dimension_numbers = #tpu.dot_dimension_numbers<[1], [0], [0], [1], [0, 0, 1, 1], [], []>} : vector<8x32xf32>, vector<32x128xf32>, vector<8x128xf32> -> vector<8x128xf32>
    %c0_3 = arith.constant 0 : index
    %c0_4 = arith.constant 0 : index
    %3 = vector.load %arg3[%c0_3, %c0_4] : memref<1x128xf32, #tpu.memory_space<vmem>>, vector<1x128xf32>
    %4 = vector.broadcast %3 : vector<1x128xf32> to vector<8x128xf32>
    %5 = arith.addf %2, %4 : vector<8x128xf32>
    %cst_5 = arith.constant 0.000000e+00 : f32
    %6 = vector.broadcast %cst_5 : f32 to vector<8x128xf32>
    %7 = arith.maximumf %5, %6 : vector<8x128xf32>
    %c0_6 = arith.constant 0 : index
    %c0_7 = arith.constant 0 : index
    %8 = vector.load %arg4[%c0_6, %c0_7] : memref<128x128xf32, #tpu.memory_space<vmem>>, vector<128x128xf32>
    %cst_8 = arith.constant dense<0.000000e+00> : vector<8x128xf32>
    %9 = tpu.matmul %7, %8, %cst_8 {dimension_numbers = #tpu.dot_dimension_numbers<[1], [0], [0], [1], [0, 0, 1, 1], [], []>} : vector<8x128xf32>, vector<128x128xf32>, vector<8x128xf32> -> vector<8x128xf32>
    %c0_9 = arith.constant 0 : index
    %c0_10 = arith.constant 0 : index
    %10 = vector.load %arg5[%c0_9, %c0_10] : memref<1x128xf32, #tpu.memory_space<vmem>>, vector<1x128xf32>
    %11 = vector.broadcast %10 : vector<1x128xf32> to vector<8x128xf32>
    %12 = arith.addf %9, %11 : vector<8x128xf32>
    %c0_11 = arith.constant 0 : index
    %c0_12 = arith.constant 0 : index
    %13 = vector.load %arg6[%c0_11, %c0_12] : memref<8x128xf32, #tpu.memory_space<vmem>>, vector<8x128xf32>
    tpu.vector_store %arg6[%c0_11, %c0_12], %12 {strides = array<i32>} : memref<8x128xf32, #tpu.memory_space<vmem>>, vector<8x128xf32>,
    return
  }
  func.func @transform_0(%arg0: i32) -> (i32, i32) {
    %c0_i32 = arith.constant 0 : i32
    %c0_i32_0 = arith.constant 0 : i32
    return %arg0, %c0_i32 : i32, i32
  }
  func.func @transform_1(%arg0: i32) -> (i32, i32) {
    %c0_i32 = arith.constant 0 : i32
    %c0_i32_0 = arith.constant 0 : i32
    %c0_i32_1 = arith.constant 0 : i32
    return %c0_i32, %c0_i32_0 : i32, i32
  }
  func.func @transform_2(%arg0: i32) -> (i32, i32) {
    %c0_i32 = arith.constant 0 : i32
    %c0_i32_0 = arith.constant 0 : i32
    %c0_i32_1 = arith.constant 0 : i32
    return %c0_i32, %c0_i32_0 : i32, i32
  }
  func.func @transform_3(%arg0: i32) -> (i32, i32) {
    %c0_i32 = arith.constant 0 : i32
    %c0_i32_0 = arith.constant 0 : i32
    %c0_i32_1 = arith.constant 0 : i32
    return %c0_i32, %c0_i32_0 : i32, i32
  }
  func.func @transform_4(%arg0: i32) -> (i32, i32) {
    %c0_i32 = arith.constant 0 : i32
    %c0_i32_0 = arith.constant 0 : i32
    %c0_i32_1 = arith.constant 0 : i32
    return %c0_i32, %c0_i32_0 : i32, i32
  }
  func.func @transform_5(%arg0: i32) -> (i32, i32) {
    %c0_i32 = arith.constant 0 : i32
    %c0_i32_0 = arith.constant 0 : i32
    return %arg0, %c0_i32 : i32, i32
  }
}

</mosaic_0001>

<llo_original>
// kernel: _ao_forward.1
$region0: #{_ao_forward.1}
  #allocation0 [shape = 'u32[]', space=smem, size = 0x4, offset = 0x4, fixed_abs, tag = 'smem constant byte address 0x4 - core index']
  #allocation1 [shape = 'u32[144,128]{1,0:T(1,128)}', space=vmem, size = 0x12000, scoped, tag = 'internal scratch']
  %s0 = inlined_call_operand.hbm [shape: f32[16,32], index: 0, kind: input, shape index: {}]
  %s1 = inlined_call_operand.hbm [shape: f32[32,128], index: 1, kind: input, shape index: {}]
  %s2 = inlined_call_operand.vmem [shape: f32[1,128], index: 2, kind: input, shape index: {}]
  %s3 = inlined_call_operand.hbm [shape: f32[128,128], index: 3, kind: input, shape index: {}]
  %s4 = inlined_call_operand.vmem [shape: f32[1,128], index: 4, kind: input, shape index: {}]
  %s5 = inlined_call_operand.vmem [shape: f32[16,128], index: 5, kind: output, shape index: {}]
  %s6 = sld [smem:[#allocation0]]
  $region65: #{_ao_forward.1} parent=0
    _
  %s8 = ssub.s32 1, %s6
  %s9 = scalar_select 0, %s8, %s6
  $region1: #{_ao_forward.1} parent=0
    #allocation2 [shape = 'u8[8192]{0}', space=vmem, size = 0x2000, scoped, tag = 'input window, operand 0']
    #allocation3 [shape = 's32[2]{0}', space=sflag, size = 0x8, scoped, tag = 'scoped memory for _ao_forward.1']
    #allocation4 [shape = 'u8[16384]{0}', space=vmem, size = 0x4000, scoped, tag = 'input window, operand 1, single buffered']
    #allocation5 [shape = 's32[1]{0}', space=sflag, size = 0x4, scoped, tag = 'scoped memory for _ao_forward.1']
    #allocation6 [shape = 'u8[65536]{0}', space=vmem, size = 0x10000, scoped, tag = 'input window, operand 3, single buffered']
    %10 = vsyncpa [#allocation3], 0
    %s11 = scalar_lea.sflag [#allocation3], 1
    %12 = vsyncpa %s11, 0
    %13 = vsyncpa [#allocation5], 0
    loop: start=0, step=1, limit=4
    $region2: #{_ao_forward.1} parent=1 // loop_pre_header
      _
    $region3: #{_ao_forward.1} parent=1 // loop_header
      %s15 = sphi 0, %s19
      %p16 = scmp.ge.s32.totalorder %s15, 4
      %s25 = sphi 0, %s27
      %s28 = sphi 0, %s25
      %s29 = sphi 0, %s28
      %s45 = sphi 0, %s29
      %s49 = sphi 0, %s49
      %s51 = sphi 0, %s49
      %s52 = sphi 0, %s51
      %s66 = sphi 0, %s52
      %s70 = sphi 0, %s70
      %s72 = sphi 0, %s70
      %s73 = sphi 0, %s72
      %s87 = sphi 0, %s73
      %s91 = sphi 0, %s91
      %s93 = sphi 0, %s91
      %s94 = sphi 0, %s93
      %s108 = sphi 0, %s94
      %s112 = sphi 0, %s112
      %s114 = sphi 0, %s112
      %s115 = sphi 0, %s114
      %s129 = sphi 0, %s115
      %s135 = sphi 0, %s137
      %s138 = sphi 0, %s135
      %s139 = sphi 0, %s138
      %s155 = sphi 0, %s139
    $region4: #{_ao_forward.1} parent=1 // loop_header_branch
      %18 = sbr.rel (%p16) target = $region8
    $region5: #{_ao_forward.1} parent=1 // loop_body
      %s20 = ssub.s32 %s15, 1
      %s21 = ssub.s32 %s15, 2
      %s22 = sadd.s32 %s15, 1
      %s23 = ssub.s32 %s15, %s22
      %p24 = scmp.eq.s32.totalorder %s23, 0
      %s26 = sadd.s32 %s25, 1
      %s27 = scalar_select %p24, %s25, %s26
      %p30 = pneg %p24
      %p31 = scmp.eq.s32.totalorder %s15, 1
      %p32 = por %p30, %p31
      %p33 = scmp.ne.s32.totalorder %s25, %s28
      %p34 = scmp.eq.s32.totalorder %s15, 0
      %p35 = por %p33, %p34
      %p36 = scmp.ne.s32.totalorder %s25, %s28
      %p37 = scmp.eq.s32.totalorder %s20, 1
      %p38 = por %p36, %p37
      %p39 = scmp.ne.s32.totalorder %s28, %s29
      %p40 = scmp.eq.s32.totalorder %s20, 0
      %p41 = por %p39, %p40
      %p42 = scmp.ne.s32.totalorder %s28, %s29
      %p43 = scmp.eq.s32.totalorder %s21, 1
      %p44 = por %p42, %p43
      %p46 = scmp.ne.s32.totalorder %s29, %s45
      %p47 = scmp.eq.s32.totalorder %s21, 0
      %p48 = por %p46, %p47
      %s50 = sadd.s32 %s49, 1
      %p53 = scmp.eq.s32.totalorder %s15, 1
      %p54 = scmp.ne.s32.totalorder %s49, %s51
      %p55 = scmp.eq.s32.totalorder %s15, 0
      %p56 = por %p54, %p55
      %p57 = scmp.ne.s32.totalorder %s49, %s51
      %p58 = scmp.eq.s32.totalorder %s20, 1
      %p59 = por %p57, %p58
      %p60 = scmp.ne.s32.totalorder %s51, %s52
      %p61 = scmp.eq.s32.totalorder %s20, 0
      %p62 = por %p60, %p61
      %p63 = scmp.ne.s32.totalorder %s51, %s52
      %p64 = scmp.eq.s32.totalorder %s21, 1
      %p65 = por %p63, %p64
      %p67 = scmp.ne.s32.totalorder %s52, %s66
      %p68 = scmp.eq.s32.totalorder %s21, 0
      %p69 = por %p67, %p68
      %s71 = sadd.s32 %s70, 1
      %p74 = scmp.eq.s32.totalorder %s15, 1
      %p75 = scmp.ne.s32.totalorder %s70, %s72
      %p76 = scmp.eq.s32.totalorder %s15, 0
      %p77 = por %p75, %p76
      %p78 = scmp.ne.s32.totalorder %s70, %s72
      %p79 = scmp.eq.s32.totalorder %s20, 1
      %p80 = por %p78, %p79
      %p81 = scmp.ne.s32.totalorder %s72, %s73
      %p82 = scmp.eq.s32.totalorder %s20, 0
      %p83 = por %p81, %p82
      %p84 = scmp.ne.s32.totalorder %s72, %s73
      %p85 = scmp.eq.s32.totalorder %s21, 1
      %p86 = por %p84, %p85
      %p88 = scmp.ne.s32.totalorder %s73, %s87
      %p89 = scmp.eq.s32.totalorder %s21, 0
      %p90 = por %p88, %p89
      %s92 = sadd.s32 %s91, 1
      %p95 = scmp.eq.s32.totalorder %s15, 1
      %p96 = scmp.ne.s32.totalorder %s91, %s93
      %p97 = scmp.eq.s32.totalorder %s15, 0
      %p98 = por %p96, %p97
      %p99 = scmp.ne.s32.totalorder %s91, %s93
      %p100 = scmp.eq.s32.totalorder %s20, 1
      %p101 = por %p99, %p100
      %p102 = scmp.ne.s32.totalorder %s93, %s94
      %p103 = scmp.eq.s32.totalorder %s20, 0
      %p104 = por %p102, %p103
      %p105 = scmp.ne.s32.totalorder %s93, %s94
      %p106 = scmp.eq.s32.totalorder %s21, 1
      %p107 = por %p105, %p106
      %p109 = scmp.ne.s32.totalorder %s94, %s108
      %p110 = scmp.eq.s32.totalorder %s21, 0
      %p111 = por %p109, %p110
      %s113 = sadd.s32 %s112, 1
      %p116 = scmp.eq.s32.totalorder %s15, 1
      %p117 = scmp.ne.s32.totalorder %s112, %s114
      %p118 = scmp.eq.s32.totalorder %s15, 0
      %p119 = por %p117, %p118
      %p120 = scmp.ne.s32.totalorder %s112, %s114
      %p121 = scmp.eq.s32.totalorder %s20, 1
      %p122 = por %p120, %p121
      %p123 = scmp.ne.s32.totalorder %s114, %s115
      %p124 = scmp.eq.s32.totalorder %s20, 0
      %p125 = por %p123, %p124
      %p126 = scmp.ne.s32.totalorder %s114, %s115
      %p127 = scmp.eq.s32.totalorder %s21, 1
      %p128 = por %p126, %p127
      %p130 = scmp.ne.s32.totalorder %s115, %s129
      %p131 = scmp.eq.s32.totalorder %s21, 0
      %p132 = por %p130, %p131
      %s133 = ssub.s32 %s15, %s22
      %p134 = scmp.eq.s32.totalorder %s133, 0
      %s136 = sadd.s32 %s135, 1
      %s137 = scalar_select %p134, %s135, %s136
      %p140 = pneg %p134
      %p141 = scmp.eq.s32.totalorder %s15, 1
      %p142 = por %p140, %p141
      %p143 = scmp.ne.s32.totalorder %s135, %s138
      %p144 = scmp.eq.s32.totalorder %s15, 0
      %p145 = por %p143, %p144
      %p146 = scmp.ne.s32.totalorder %s135, %s138
      %p147 = scmp.eq.s32.totalorder %s20, 1
      %p148 = por %p146, %p147
      %p149 = scmp.ne.s32.totalorder %s138, %s139
      %p150 = scmp.eq.s32.totalorder %s20, 0
      %p151 = por %p149, %p150
      %p152 = scmp.ne.s32.totalorder %s138, %s139
      %p153 = scmp.eq.s32.totalorder %s21, 1
      %p154 = por %p152, %p153
      %p156 = scmp.ne.s32.totalorder %s139, %s155
      %p157 = scmp.eq.s32.totalorder %s21, 0
      %p158 = por %p156, %p157
      %p159 = scmp.le.s32.totalorder 1, %s15
      %p160 = scmp.lt.s32.totalorder %s15, 3
      %p161 = pnand %p159, %p160
      %p162 = pneg %p161
      // Predicated region
      $region9: #{_ao_forward.1} parent=5 // pred_check
        _
      $region10: #{_ao_forward.1} parent=5 // pred_check_branch
        %164 = sbr.rel (%p161) target = $region12
      $region11: #{_ao_forward.1} parent=5 // pred_region
        %s165 = ssub.s32 %s15, 1
        // Predicated region
        $region13: #{_ao_forward.1} parent=11 // pred_check
          %p166 = pneg %p62
        $region14: #{_ao_forward.1} parent=11 // pred_check_branch
          %168 = sbr.rel (%p166) target = $region16
        $region15: #{_ao_forward.1} parent=11 // pred_region
          %s170 = ssub.s32 512, 512
          %171 = vsyncadd [#allocation5], %s170
          %s172 = sshll.u32 [#allocation4], 4
          %s173 = int_to_ptr.vmem [resolvable:$true] %s172
          %178 = dma.hbm_to_vmem [thread:$0]  %s1, 512, %s173, [#allocation5], 128, 128, 8
        $region16: #{_ao_forward.1} parent=11 // pred_fallthru
          _
        // Predicated region
        $region17: #{_ao_forward.1} parent=11 // pred_check
          %p179 = pneg %p83
        $region18: #{_ao_forward.1} parent=11 // pred_check_branch
          %181 = sbr.rel (%p179) target = $region20
        $region19: #{_ao_forward.1} parent=11 // pred_region
          _
        $region20: #{_ao_forward.1} parent=11 // pred_fallthru
          _
        // Predicated region
        $region21: #{_ao_forward.1} parent=11 // pred_check
          %p182 = pneg %p104
        $region22: #{_ao_forward.1} parent=11 // pred_check_branch
          %184 = sbr.rel (%p182) target = $region24
        $region23: #{_ao_forward.1} parent=11 // pred_region
          %s186 = ssub.s32 2048, 2048
          %187 = vsyncadd [#allocation5], %s186
          %s188 = sshll.u32 [#allocation6], 4
          %s189 = int_to_ptr.vmem [resolvable:$true] %s188
          %194 = dma.hbm_to_vmem [thread:$0]  %s3, 2048, %s189, [#allocation5], 128, 128, 8
        $region24: #{_ao_forward.1} parent=11 // pred_fallthru
          _
        // Predicated region
        $region25: #{_ao_forward.1} parent=11 // pred_check
          %p195 = pneg %p125
        $region26: #{_ao_forward.1} parent=11 // pred_check_branch
          %197 = sbr.rel (%p195) target = $region28
        $region27: #{_ao_forward.1} parent=11 // pred_region
          _
        $region28: #{_ao_forward.1} parent=11 // pred_fallthru
          _
      $region12: #{_ao_forward.1} parent=5 // pred_fallthru
        _
      %p198 = scmp.lt.s32.totalorder %s15, 2
      // Predicated region
      $region29: #{_ao_forward.1} parent=5 // pred_check
        %p199 = pneg %p198
      $region30: #{_ao_forward.1} parent=5 // pred_check_branch
        %201 = sbr.rel (%p199) target = $region32
      $region31: #{_ao_forward.1} parent=5 // pred_region
        // Predicated region
        $region33: #{_ao_forward.1} parent=31 // pred_check
          %p202 = pneg %p35
        $region34: #{_ao_forward.1} parent=31 // pred_check_branch
          %204 = sbr.rel (%p202) target = $region36
        $region35: #{_ao_forward.1} parent=31 // pred_region
          %s205 = sand.u32 %s25, 1
          %s206 = scalar_lea.sflag [#allocation3], %s205
          %s207 = sand.u32 %s25, 1
          %s208 = smul.addr %s207, 8
          %s209 = scalar_lea.vmem [#allocation2], %s208
          %s211 = ssub.s32 128, 128
          %212 = vsyncadd %s206, %s211
          %s213 = smul.addr %s15, 128
          %s214 = scalar_lea.hbm %s0, %s213
          %s216 = sshll.u32 %s209, 4
          %s217 = int_to_ptr.vmem [resolvable:$true] %s216
          %219 = dma.hbm_to_vmem [thread:$0]  %s214, 128, %s217, %s206
        $region36: #{_ao_forward.1} parent=31 // pred_fallthru
          _
      $region32: #{_ao_forward.1} parent=5 // pred_fallthru
        _
      %p220 = scmp.le.s32.totalorder 1, %s15
      %p221 = scmp.lt.s32.totalorder %s15, 3
      %p222 = pnand %p220, %p221
      %p223 = pneg %p222
      // Predicated region
      $region37: #{_ao_forward.1} parent=5 // pred_check
        _
      $region38: #{_ao_forward.1} parent=5 // pred_check_branch
        %225 = sbr.rel (%p222) target = $region40
      $region39: #{_ao_forward.1} parent=5 // pred_region
        %s226 = ssub.s32 %s15, 1
        %s227 = sand.u32 %s28, 1
        %s228 = scalar_lea.sflag [#allocation3], %s227
        %s229 = sand.u32 %s28, 1
        %s230 = smul.addr %s229, 8
        %s231 = scalar_lea.vmem [#allocation2], %s230
        // Predicated region
        $region41: #{_ao_forward.1} parent=39 // pred_check
          %p232 = pneg %p41
        $region42: #{_ao_forward.1} parent=39 // pred_check_branch
          %234 = sbr.rel (%p232) target = $region44
        $region43: #{_ao_forward.1} parent=39 // pred_region
          %235 = dma.done %s228, 128
        $region44: #{_ao_forward.1} parent=39 // pred_fallthru
          _
        // Predicated region
        $region45: #{_ao_forward.1} parent=39 // pred_check
          %p236 = pneg %p62
        $region46: #{_ao_forward.1} parent=39 // pred_check_branch
          %238 = sbr.rel (%p236) target = $region48
        $region47: #{_ao_forward.1} parent=39 // pred_region
          %239 = dma.done [#allocation5], 512
        $region48: #{_ao_forward.1} parent=39 // pred_fallthru
          _
        // Predicated region
        $region49: #{_ao_forward.1} parent=39 // pred_check
          %p240 = pneg %p104
        $region50: #{_ao_forward.1} parent=39 // pred_check_branch
          %242 = sbr.rel (%p240) target = $region52
        $region51: #{_ao_forward.1} parent=39 // pred_region
          %243 = dma.done [#allocation5], 2048
        $region52: #{_ao_forward.1} parent=39 // pred_fallthru
          _
        %s244 = sand.u32 %s28, 1
        %s245 = scalar_lea.sflag [#allocation3], %s244
        %s246 = sand.u32 %s28, 1
        %s247 = smul.addr %s246, 8
        %s248 = scalar_lea.vmem [#allocation2], %s247
        %p249 = pneg %p41
        %p250 = pneg %p38
        %p251 = pneg %p62
        %p252 = pneg %p59
        %p253 = pneg %p83
        %p254 = pneg %p80
        %p255 = pneg %p104
        %p256 = pneg %p101
        %p257 = pneg %p125
        %p258 = pneg %p122
        %p259 = pneg %p151
        %p260 = pneg %p148
        %p261 = scmp.lt.s32.totalorder %s20, 1
        %s262 = scalar_select %p261, %s20, 1
        %s263 = smul.addr %s262, 8
        %s264 = scalar_lea.vmem %s5, %s263
        %p265 = scmp.lt.s32.totalorder %s20, 1
        %s266 = scalar_select %p265, %s20, 1
        %s267 = smul.addr %s266, 8
        %s268 = scalar_lea.vmem %s5, %s267
        %v269 = vld [vmem:[%s231] sm:$0xff]
        %v270 = vld [vmem:[#allocation4] sm:$0xff]
        %v271 = vld [vmem:[#allocation4 + $0x8] sm:$0xff]
        %v272 = vld [vmem:[#allocation4 + $0x10] sm:$0xff]
        %v273 = vld [vmem:[#allocation4 + $0x18] sm:$0xff]
        %v274 = vld [vmem:[%s2] sm:$0x1]
        %v276 = vlaneseq
        %v277 = vshrl.u32 %v276, 7
        %v278 = vsub.s32 0, %v277
        %v279 = vrot.slane %v274, %v278
        %vm281 = vcmask 261120
        %v283 = vsel %vm281, %v269, 0
        %285 = vmatprep.subr.mxu0 0.0
        %286 = vmatpush1.msra.mxu0 0.0
        %287 = vmatprep.subr.mxu0 0.0
        %288 = vmatpush1.msra.mxu0 0.0
        %289 = vmatprep.subr.mxu0 0.0
        %290 = vmatpush1.msra.mxu0 0.0
        %291 = vmatprep.subr.mxu0 0.0
        %292 = vmatpush1.msra.mxu0 0.0
        %293 = vmatprep.subr.mxu0 0.0
        %294 = vmatpush1.msra.mxu0 0.0
        %295 = vmatprep.subr.mxu0 0.0
        %296 = vmatpush1.msra.mxu0 0.0
        %297 = vmatprep.subr.mxu0 0.0
        %298 = vmatpush1.msra.mxu0 0.0
        %299 = vmatprep.subr.mxu0 0.0
        %300 = vmatpush1.msra.mxu0 0.0
        %301 = vmatprep.subr.mxu0 0.0
        %302 = vmatpush1.msra.mxu0 0.0
        %303 = vmatprep.subr.mxu0 0.0
        %304 = vmatpush1.msra.mxu0 0.0
        %305 = vmatprep.subr.mxu0 0.0
        %306 = vmatpush1.msra.mxu0 0.0
        %307 = vmatprep.subr.mxu0 0.0
        %308 = vmatpush1.msra.mxu0 0.0
        %309 = vmatprep.subr.mxu0 0.0
        %310 = vmatpush1.msra.mxu0 %v273
        %311 = vmatprep.subr.mxu0 0.0
        %312 = vmatpush1.msra.mxu0 %v272
        %313 = vmatprep.subr.mxu0 0.0
        %314 = vmatpush1.msra.mxu0 %v271
        %315 = vmatprep.subr.mxu0 0.0
        %316 = vmatpush1.msra.mxu0 %v270
        %317 = vmatprep.subr.mxu0 0.0
        %318 = vmatpush2.msra.mxu0 0.0
        %319 = vmatprep.subr.mxu0 0.0
        %320 = vmatpush2.msra.mxu0 0.0
        %321 = vmatprep.subr.mxu0 0.0
        %322 = vmatpush2.msra.mxu0 0.0
        %323 = vmatprep.subr.mxu0 0.0
        %324 = vmatpush2.msra.mxu0 0.0
        %325 = vmatprep.subr.mxu0 0.0
        %326 = vmatpush2.msra.mxu0 0.0
        %327 = vmatprep.subr.mxu0 0.0
        %328 = vmatpush2.msra.mxu0 0.0
        %329 = vmatprep.subr.mxu0 0.0
        %330 = vmatpush2.msra.mxu0 0.0
        %331 = vmatprep.subr.mxu0 0.0
        %332 = vmatpush2.msra.mxu0 0.0
        %333 = vmatprep.subr.mxu0 0.0
        %334 = vmatpush2.msra.mxu0 0.0
        %335 = vmatprep.subr.mxu0 0.0
        %336 = vmatpush2.msra.mxu0 0.0
        %337 = vmatprep.subr.mxu0 0.0
        %338 = vmatpush2.msra.mxu0 0.0
        %339 = vmatprep.subr.mxu0 0.0
        %340 = vmatpush2.msra.mxu0 0.0
        %341 = vmatprep.subr.mxu0 0.0
        %342 = vmatpush2.msra.mxu0 0.0
        %343 = vmatprep.subr.mxu0 0.0
        %344 = vmatpush2.msra.mxu0 0.0
        %345 = vmatprep.subr.mxu0 0.0
        %346 = vmatpush2.msra.mxu0 0.0
        %347 = vmatprep.subr.mxu0 0.0
        %348 = vmatpush2.msra.mxu0 0.0
        %349 = vmatprep.mubr.f32.mxu0 0.0
        %350 = vmatmul.mubr.f32.gmra.mxu0 %v283
        %v351 = vpop.f32.mrf.mxu0
        %v352 = vadd.f32 %v279, %v351
        %v353 = vpop.f32.mrf.mxu0
        %354 = vdwg.mxu0
        %v355 = vmax.f32 %v352, 0.0
        %v356 = vld [vmem:[#allocation6] sm:$0xff]
        %v357 = vld [vmem:[#allocation6 + $0x8] sm:$0xff]
        %v358 = vld [vmem:[#allocation6 + $0x10] sm:$0xff]
        %v359 = vld [vmem:[#allocation6 + $0x18] sm:$0xff]
        %v360 = vld [vmem:[#allocation6 + $0x20] sm:$0xff]
        %v361 = vld [vmem:[#allocation6 + $0x28] sm:$0xff]
        %v362 = vld [vmem:[#allocation6 + $0x30] sm:$0xff]
        %v363 = vld [vmem:[#allocation6 + $0x38] sm:$0xff]
        %v364 = vld [vmem:[#allocation6 + $0x40] sm:$0xff]
        %v365 = vld [vmem:[#allocation6 + $0x48] sm:$0xff]
        %v366 = vld [vmem:[#allocation6 + $0x50] sm:$0xff]
        %v367 = vld [vmem:[#allocation6 + $0x58] sm:$0xff]
        %v368 = vld [vmem:[#allocation6 + $0x60] sm:$0xff]
        %v369 = vld [vmem:[#allocation6 + $0x68] sm:$0xff]
        %v370 = vld [vmem:[#allocation6 + $0x70] sm:$0xff]
        %v371 = vld [vmem:[#allocation6 + $0x78] sm:$0xff]
        %v372 = vld [vmem:[%s4] sm:$0x1]
        %v374 = vlaneseq
        %v375 = vshrl.u32 %v374, 7
        %v376 = vsub.s32 0, %v375
        %v377 = vrot.slane %v372, %v376
        %379 = vmatprep.subr.mxu0 0.0
        %380 = vmatpush1.msra.mxu0 %v371
        %381 = vmatprep.subr.mxu0 0.0
        %382 = vmatpush1.msra.mxu0 %v370
        %383 = vmatprep.subr.mxu0 0.0
        %384 = vmatpush1.msra.mxu0 %v369
        %385 = vmatprep.subr.mxu0 0.0
        %386 = vmatpush1.msra.mxu0 %v368
        %387 = vmatprep.subr.mxu0 0.0
        %388 = vmatpush1.msra.mxu0 %v367
        %389 = vmatprep.subr.mxu0 0.0
        %390 = vmatpush1.msra.mxu0 %v366
        %391 = vmatprep.subr.mxu0 0.0
        %392 = vmatpush1.msra.mxu0 %v365
        %393 = vmatprep.subr.mxu0 0.0
        %394 = vmatpush1.msra.mxu0 %v364
        %395 = vmatprep.subr.mxu0 0.0
        %396 = vmatpush1.msra.mxu0 %v363
        %397 = vmatprep.subr.mxu0 0.0
        %398 = vmatpush1.msra.mxu0 %v362
        %399 = vmatprep.subr.mxu0 0.0
        %400 = vmatpush1.msra.mxu0 %v361
        %401 = vmatprep.subr.mxu0 0.0
        %402 = vmatpush1.msra.mxu0 %v360
        %403 = vmatprep.subr.mxu0 0.0
        %404 = vmatpush1.msra.mxu0 %v359
        %405 = vmatprep.subr.mxu0 0.0
        %406 = vmatpush1.msra.mxu0 %v358
        %407 = vmatprep.subr.mxu0 0.0
        %408 = vmatpush1.msra.mxu0 %v357
        %409 = vmatprep.subr.mxu0 0.0
        %410 = vmatpush1.msra.mxu0 %v356
        %411 = vmatprep.subr.mxu0 0.0
        %412 = vmatpush2.msra.mxu0 0.0
        %413 = vmatprep.subr.mxu0 0.0
        %414 = vmatpush2.msra.mxu0 0.0
        %415 = vmatprep.subr.mxu0 0.0
        %416 = vmatpush2.msra.mxu0 0.0
        %417 = vmatprep.subr.mxu0 0.0
        %418 = vmatpush2.msra.mxu0 0.0
        %419 = vmatprep.subr.mxu0 0.0
        %420 = vmatpush2.msra.mxu0 0.0
        %421 = vmatprep.subr.mxu0 0.0
        %422 = vmatpush2.msra.mxu0 0.0
        %423 = vmatprep.subr.mxu0 0.0
        %424 = vmatpush2.msra.mxu0 0.0
        %425 = vmatprep.subr.mxu0 0.0
        %426 = vmatpush2.msra.mxu0 0.0
        %427 = vmatprep.subr.mxu0 0.0
        %428 = vmatpush2.msra.mxu0 0.0
        %429 = vmatprep.subr.mxu0 0.0
        %430 = vmatpush2.msra.mxu0 0.0
        %431 = vmatprep.subr.mxu0 0.0
        %432 = vmatpush2.msra.mxu0 0.0
        %433 = vmatprep.subr.mxu0 0.0
        %434 = vmatpush2.msra.mxu0 0.0
        %435 = vmatprep.subr.mxu0 0.0
        %436 = vmatpush2.msra.mxu0 0.0
        %437 = vmatprep.subr.mxu0 0.0
        %438 = vmatpush2.msra.mxu0 0.0
        %439 = vmatprep.subr.mxu0 0.0
        %440 = vmatpush2.msra.mxu0 0.0
        %441 = vmatprep.subr.mxu0 0.0
        %442 = vmatpush2.msra.mxu0 0.0
        %443 = vmatprep.mubr.f32.mxu0 0.0
        %444 = vmatmul.mubr.f32.gmra.mxu0 %v355
        %v445 = vpop.f32.mrf.mxu0
        %v446 = vadd.f32 %v377, %v445
        %v447 = vpop.f32.mrf.mxu0
        %448 = vdwg.mxu0
        %449 = vst [vmem:[%s268] sm:$0xff] %v446
        %p450 = scmp.lt.s32.totalorder %s20, 1
        %s451 = scalar_select %p450, %s20, 1
        %s452 = smul.addr %s451, 8
        %s453 = scalar_lea.vmem %s5, %s452
        // Predicated region
        $region53: #{_ao_forward.1} parent=39 // pred_check
          %p454 = pneg %p148
        $region54: #{_ao_forward.1} parent=39 // pred_check_branch
          %456 = sbr.rel (%p454) target = $region56
        $region55: #{_ao_forward.1} parent=39 // pred_region
          _
        $region56: #{_ao_forward.1} parent=39 // pred_fallthru
          _
      $region40: #{_ao_forward.1} parent=5 // pred_fallthru
        _
      %p457 = scmp.le.s32.totalorder 2, %s15
      // Predicated region
      $region57: #{_ao_forward.1} parent=5 // pred_check
        %p458 = pneg %p457
      $region58: #{_ao_forward.1} parent=5 // pred_check_branch
        %460 = sbr.rel (%p458) target = $region60
      $region59: #{_ao_forward.1} parent=5 // pred_region
        %s461 = ssub.s32 %s15, 2
        // Predicated region
        $region61: #{_ao_forward.1} parent=59 // pred_check
          %p462 = pneg %p154
        $region62: #{_ao_forward.1} parent=59 // pred_check_branch
          %464 = sbr.rel (%p462) target = $region64
        $region63: #{_ao_forward.1} parent=59 // pred_region
          %p465 = scmp.lt.s32.totalorder %s21, 1
          %s466 = scalar_select %p465, %s21, 1
          %s467 = smul.addr %s466, 8
          %s468 = scalar_lea.vmem %s5, %s467
        $region64: #{_ao_forward.1} parent=59 // pred_fallthru
          _
      $region60: #{_ao_forward.1} parent=5 // pred_fallthru
        _
    $region6: #{_ao_forward.1} parent=1 // loop_footer
      %s19 = sadd.s32 1, %s15
    $region7: #{_ao_forward.1} parent=1 // loop_footer_branch
      %14 = sbr.rel target = $region3
    $region8: #{_ao_forward.1} parent=1 // loop_exit
      _
    %469 = vsyncpa [#allocation3], 1
    %s470 = scalar_lea.sflag [#allocation3], 1
    %471 = vsyncpa %s470, 1
    %472 = vsyncpa [#allocation5], 1

</llo_original>
